<compile_context>
chip_gen: v6e
topology: v6e:2x2x1
jax: 0.10.0
libtpu: 0.0.40
codegen_flags: <defaults>
</compile_context>

<pallas_src>
import jax
import jax.numpy as jnp
from jax import lax
from jax.experimental import pallas as pl
from jax.experimental.pallas import tpu as pltpu  # noqa: F401  (TPU backend registration)

BN_EPS = 1e-5
LANE = 128  # lane-dense feature width


# ---------------------------------------------------------------------------
# Fused generator kernel
# ---------------------------------------------------------------------------
def _make_generator_kernel(n_hidden):
    """Refs: x_pad (B,128) f32, w_stack (H,128,128) bf16, gamma (H,1,128) f32,
    beta (H,1,128) f32, w_final (128,128) bf16, b_final (1,128) f32, out."""

    def kernel(x_ref, w_ref, gamma_ref, beta_ref, wf_ref, bf_ref, o_ref):
        def layer(i, x):
            # Linear (bias dropped: cancelled exactly by BN mean subtraction).
            # bf16 MXU operands, f32 accumulation.
            w = w_ref[i]                                        # (128,128) bf16
            y = jnp.dot(x.astype(jnp.bfloat16), w,
                        preferred_element_type=jnp.float32)     # (B,128) f32
            # BatchNorm1d, training mode (batch statistics, biased variance).
            # NOTE: statistics are over the whole batch held in one block; B is
            # the true batch (no padded rows), so jnp.mean over axis 0 is exact.
            mean = jnp.mean(y, axis=0, keepdims=True)
            yc = y - mean                                       # centered, reused
            var = jnp.mean(yc * yc, axis=0, keepdims=True)
            scale = gamma_ref[i] * lax.rsqrt(var + BN_EPS)      # gamma folded in
            z = yc * scale + beta_ref[i]
            # ReLU
            return jnp.maximum(z, 0.0)

        x = lax.fori_loop(0, n_hidden, layer, x_ref[...])
        # Final block: Linear (with bias) -> ReLU   (library_size=None => no LSN)
        y = jnp.dot(x.astype(jnp.bfloat16), wf_ref[...],
                    preferred_element_type=jnp.float32) + bf_ref[...]
        o_ref[...] = jnp.maximum(y, 0.0)

    return kernel


def _full_spec(shape):
    return pl.BlockSpec(shape, lambda: (0,) * len(shape))


def generator_forward(padded_params, noise):
    """Single fused pallas_call over the whole generator.

    Accepts the RAW (B, z_input) noise; the lane pad to (B, 128) happens inside
    this (jitted) function, so there is no extra dispatch for padding.
    """
    w_stack = padded_params["w_stack"]         # (H, 128, 128) bf16
    gamma = padded_params["gamma_stack"]       # (H, 1, 128)   f32 (pad lanes = 0)
    beta = padded_params["beta_stack"]         # (H, 1, 128)   f32
    wf = padded_params["w_final"]              # (128, 128)    bf16
    bf = padded_params["b_final"]              # (1, 128)      f32
    n_hidden = w_stack.shape[0]

    B, z = noise.shape
    noise_pad = jnp.zeros((B, LANE), jnp.float32).at[:, :z].set(noise)

    inputs = [noise_pad, w_stack, gamma, beta, wf, bf]

    flops = 2 * B * LANE * LANE * (n_hidden + 1)
    transcendentals = n_hidden * LANE                       # rsqrt per feature/layer
    bytes_accessed = (sum(int(a.size) * a.dtype.itemsize for a in inputs)
                      + B * LANE * 4)

    return pl.pallas_call(
        _make_generator_kernel(n_hidden),
        out_shape=jax.ShapeDtypeStruct((B, LANE), jnp.float32),
        in_specs=[_full_spec(a.shape) for a in inputs],
        out_specs=_full_spec((B, LANE)),
        cost_estimate=pl.CostEstimate(
            flops=flops,
            transcendentals=transcendentals,
            bytes_accessed=bytes_accessed,
        ),
    )(*inputs)


# ---------------------------------------------------------------------------
# Parameter construction (mirrors the PyTorch __init__ shapes / init schemes)
# ---------------------------------------------------------------------------
def init_generator_params(key, z_input, output_cells_dim, gen_layers):
    """Unpadded f32 params, weights stored as (in, out) — same math as nn.Linear."""
    params = {"hidden": [], "final": None}
    in_dim = z_input
    for out_dim in gen_layers:
        key, kw, kb = jax.random.split(key, 3)
        limit = float(jnp.sqrt(6.0 / (in_dim + out_dim)))          # xavier_uniform_
        w = jax.random.uniform(kw, (in_dim, out_dim), jnp.float32, -limit, limit)
        bound = 1.0 / float(jnp.sqrt(float(in_dim)))               # default Linear bias
        b = jax.random.uniform(kb, (1, out_dim), jnp.float32, -bound, bound)
        gamma = jnp.ones((1, out_dim), jnp.float32)                # BatchNorm1d defaults
        beta = jnp.zeros((1, out_dim), jnp.float32)
        params["hidden"].append(dict(w=w, b=b, gamma=gamma, beta=beta))
        in_dim = out_dim
    key, kw = jax.random.split(key)
    std = float(jnp.sqrt(2.0 / in_dim))                            # kaiming_normal_, fan_in, relu
    w = std * jax.random.normal(kw, (in_dim, output_cells_dim), jnp.float32)
    b = jnp.zeros((1, output_cells_dim), jnp.float32)
    params["final"] = dict(w=w, b=b)
    return params


def _pad2d(a, rows, cols):
    out = jnp.zeros((rows, cols), a.dtype)
    return out.at[: a.shape[0], : a.shape[1]].set(a)


def pad_params(params):
    """Zero-pad all feature dims to 128 lanes and stack the hidden layers.

    gamma/beta pad with 0 so the padded lanes stay exactly zero through BN+ReLU
    (this invariant is load-bearing). Hidden biases are dropped (cancelled by
    the BN mean subtraction). Weights are stored bf16 for native-rate MXU feeds
    with f32 accumulation (v5e/v6e/v7x MXUs are all bf16-native)."""
    w_stack = jnp.stack([_pad2d(l["w"], LANE, LANE) for l in params["hidden"]]
                        ).astype(jnp.bfloat16)
    gamma_stack = jnp.stack([_pad2d(l["gamma"], 1, LANE) for l in params["hidden"]])
    beta_stack = jnp.stack([_pad2d(l["beta"], 1, LANE) for l in params["hidden"]])
    return dict(
        w_stack=w_stack,
        gamma_stack=gamma_stack,
        beta_stack=beta_stack,
        w_final=_pad2d(params["final"]["w"], LANE, LANE).astype(jnp.bfloat16),
        b_final=_pad2d(params["final"]["b"], 1, LANE),
    )


# ---------------------------------------------------------------------------
# Pure-JAX references
# ---------------------------------------------------------------------------
def generator_forward_ref_f32(params, noise):
    """Exact PyTorch-module semantics: f32 everywhere, hidden bias included,
    train-mode BatchNorm1d (biased batch variance)."""
    x = noise
    for layer in params["hidden"]:
        y = x @ layer["w"] + layer["b"]
        mean = jnp.mean(y, axis=0, keepdims=True)
        var = jnp.mean((y - mean) ** 2, axis=0, keepdims=True)
        y = (y - mean) / jnp.sqrt(var + BN_EPS)
        x = jnp.maximum(layer["gamma"] * y + layer["beta"], 0.0)
    y = x @ params["final"]["w"] + params["final"]["b"]
    return jnp.maximum(y, 0.0)


def generator_forward_ref_kernel_numerics(params, noise):
    """Mirrors the kernel's numerics (bf16 MXU operands, f32 accumulation/BN,
    hidden bias dropped) — used for a tight implementation check."""
    x = noise
    for layer in params["hidden"]:
        y = jnp.dot(x.astype(jnp.bfloat16), layer["w"].astype(jnp.bfloat16),
                    preferred_element_type=jnp.float32)
        mean = jnp.mean(y, axis=0, keepdims=True)
        yc = y - mean
        var = jnp.mean(yc * yc, axis=0, keepdims=True)
        scale = layer["gamma"] * lax.rsqrt(var + BN_EPS)
        x = jnp.maximum(yc * scale + layer["beta"], 0.0)
    y = jnp.dot(x.astype(jnp.bfloat16), params["final"]["w"].astype(jnp.bfloat16),
                preferred_element_type=jnp.float32) + params["final"]["b"]
    return jnp.maximum(y, 0.0)


if __name__ == "__main__":
    # Small shapes consistent with the module: noise is (batch, z_input).
    batch = 8                 # multiple of 8 (f32 sublane) — BN stats over true B
    z_input = 16
    gen_layers = [32, 64]
    output_cells_dim = 24
    library_size = None       # no LSN (see TODO at top)

    key = jax.random.PRNGKey(0)
    key_params, key_noise = jax.random.split(key)
    params = init_generator_params(key_params, z_input, output_cells_dim, gen_layers)
    noise = jax.random.normal(key_noise, (batch, z_input), jnp.float32)

    padded_params = pad_params(params)

    fwd = jax.jit(generator_forward)
    out_pad = jax.block_until_ready(fwd(padded_params, noise))
    out = out_pad[:, :output_cells_dim]

    assert out.shape == (batch, output_cells_dim), out.shape

    # Tight check vs a reference with matching numerics (bf16 MXU / f32 BN).
    ref_tight = generator_forward_ref_kernel_numerics(params, noise)
    assert jnp.allclose(out, ref_tight, atol=1e-2, rtol=1e-2), \
        "mismatch vs kernel-numerics reference"

    # Sanity check vs the exact f32 PyTorch-semantics reference (bf16 MXU
    # operands introduce ~0.2% per-layer rounding, hence the looser tolerance).
    ref_f32 = generator_forward_ref_f32(params, noise)
    assert jnp.allclose(out, ref_f32, atol=1e-1, rtol=1e-1), \
        "mismatch vs f32 module-semantics reference"

    # Padded output lanes must be exactly zero (zero-padded final W/b + ReLU).
    assert jnp.allclose(out_pad[:, output_cells_dim:], 0.0), "padding lanes not zero"

    print("KERNEL_OK")
</pallas_src>

<mosaic_0001>
module attributes {stable_mosaic.version = 11 : i64} {
  func.func @kernel(%arg0: memref<8x128xf32, #tpu.memory_space<vmem>>, %arg1: memref<2x128x128xbf16, #tpu.memory_space<vmem>>, %arg2: memref<2x1x128xf32, #tpu.memory_space<vmem>>, %arg3: memref<2x1x128xf32, #tpu.memory_space<vmem>>, %arg4: memref<128x128xbf16, #tpu.memory_space<vmem>>, %arg5: memref<1x128xf32, #tpu.memory_space<vmem>>, %arg6: memref<8x128xf32, #tpu.memory_space<vmem>>) attributes {dimension_semantics = [], scalar_prefetch = 0 : i64, scratch_operands = 0 : i64, tpu.core_type = #tpu.core_type<tc>} {
    %c0 = arith.constant 0 : index
    %c0_0 = arith.constant 0 : index
    %0 = vector.load %arg0[%c0, %c0_0] : memref<8x128xf32, #tpu.memory_space<vmem>>, vector<8x128xf32>
    %c0_i32 = arith.constant 0 : i32
    %c2_i32 = arith.constant 2 : i32
    %1 = arith.addi %c0_i32, %c2_i32 : i32
    %c1_i32 = arith.constant 1 : i32
    %2 = scf.for %arg7 = %c0_i32 to %1 step %c1_i32 iter_args(%arg8 = %0) -> (vector<8x128xf32>)  : i32 {
      %12 = arith.index_cast %arg7 : i32 to index
      %c0_9 = arith.constant 0 : index
      %c0_10 = arith.constant 0 : index
      %13 = vector.load %arg1[%12, %c0_9, %c0_10] : memref<2x128x128xbf16, #tpu.memory_space<vmem>>, vector<1x128x128xbf16>
      %14 = vector.shape_cast %13 : vector<1x128x128xbf16> to vector<128x128xbf16>
      %15 = arith.truncf %arg8 : vector<8x128xf32> to vector<8x128xbf16>
      %cst_11 = arith.constant dense<0.000000e+00> : vector<8x128xf32>
      %16 = tpu.matmul %15, %14, %cst_11 {dimension_numbers = #tpu.dot_dimension_numbers<[1], [0], [0], [1], [0, 0, 1, 1], [], []>} : vector<8x128xbf16>, vector<128x128xbf16>, vector<8x128xf32> -> vector<8x128xf32>
      %cst_12 = arith.constant dense<0.000000e+00> : vector<128xf32>
      %17 = vector.multi_reduction <add>, %16, %cst_12 [0] : vector<8x128xf32> to vector<128xf32>
      %18 = vector.shape_cast %17 : vector<128xf32> to vector<1x128xf32>
      %cst_13 = arith.constant 8.000000e+00 : f32
      %19 = vector.broadcast %cst_13 : f32 to vector<1x128xf32>
      %20 = arith.divf %18, %19 : vector<1x128xf32>
      %21 = vector.broadcast %20 : vector<1x128xf32> to vector<8x128xf32>
      %22 = arith.subf %16, %21 : vector<8x128xf32>
      %23 = arith.mulf %22, %22 : vector<8x128xf32>
      %cst_14 = arith.constant dense<0.000000e+00> : vector<128xf32>
      %24 = vector.multi_reduction <add>, %23, %cst_14 [0] : vector<8x128xf32> to vector<128xf32>
      %25 = vector.shape_cast %24 : vector<128xf32> to vector<1x128xf32>
      %cst_15 = arith.constant 8.000000e+00 : f32
      %26 = vector.broadcast %cst_15 : f32 to vector<1x128xf32>
      %27 = arith.divf %25, %26 : vector<1x128xf32>
      %28 = arith.index_cast %arg7 : i32 to index
      %c0_16 = arith.constant 0 : index
      %c0_17 = arith.constant 0 : index
      %29 = vector.load %arg2[%28, %c0_16, %c0_17] : memref<2x1x128xf32, #tpu.memory_space<vmem>>, vector<1x1x128xf32>
      %30 = vector.shape_cast %29 : vector<1x1x128xf32> to vector<1x128xf32>
      %cst_18 = arith.constant 9.99999974E-6 : f32
      %31 = vector.broadcast %cst_18 : f32 to vector<1x128xf32>
      %32 = arith.addf %27, %31 : vector<1x128xf32>
      %33 = math.rsqrt %32 : vector<1x128xf32>
      %34 = arith.mulf %30, %33 : vector<1x128xf32>
      %35 = vector.broadcast %34 : vector<1x128xf32> to vector<8x128xf32>
      %36 = arith.mulf %22, %35 : vector<8x128xf32>
      %37 = arith.index_cast %arg7 : i32 to index
      %c0_19 = arith.constant 0 : index
      %c0_20 = arith.constant 0 : index
      %38 = vector.load %arg3[%37, %c0_19, %c0_20] : memref<2x1x128xf32, #tpu.memory_space<vmem>>, vector<1x1x128xf32>
      %39 = vector.shape_cast %38 : vector<1x1x128xf32> to vector<1x128xf32>
      %40 = vector.broadcast %39 : vector<1x128xf32> to vector<8x128xf32>
      %41 = arith.addf %36, %40 : vector<8x128xf32>
      %cst_21 = arith.constant 0.000000e+00 : f32
      %42 = vector.broadcast %cst_21 : f32 to vector<8x128xf32>
      %43 = arith.maximumf %41, %42 : vector<8x128xf32>
      scf.yield %43 : vector<8x128xf32>
    }
    %c2_i32_1 = arith.constant 2 : i32
    %3 = arith.truncf %2 : vector<8x128xf32> to vector<8x128xbf16>
    %c0_2 = arith.constant 0 : index
    %c0_3 = arith.constant 0 : index
    %4 = vector.load %arg4[%c0_2, %c0_3] : memref<128x128xbf16, #tpu.memory_space<vmem>>, vector<128x128xbf16>
    %cst = arith.constant dense<0.000000e+00> : vector<8x128xf32>
    %5 = tpu.matmul %3, %4, %cst {dimension_numbers = #tpu.dot_dimension_numbers<[1], [0], [0], [1], [0, 0, 1, 1], [], []>} : vector<8x128xbf16>, vector<128x128xbf16>, vector<8x128xf32> -> vector<8x128xf32>
    %c0_4 = arith.constant 0 : index
    %c0_5 = arith.constant 0 : index
    %6 = vector.load %arg5[%c0_4, %c0_5] : memref<1x128xf32, #tpu.memory_space<vmem>>, vector<1x128xf32>
    %7 = vector.broadcast %6 : vector<1x128xf32> to vector<8x128xf32>
    %8 = arith.addf %5, %7 : vector<8x128xf32>
    %cst_6 = arith.constant 0.000000e+00 : f32
    %9 = vector.broadcast %cst_6 : f32 to vector<8x128xf32>
    %10 = arith.maximumf %8, %9 : vector<8x128xf32>
    %c0_7 = arith.constant 0 : index
    %c0_8 = arith.constant 0 : index
    %11 = vector.load %arg6[%c0_7, %c0_8] : memref<8x128xf32, #tpu.memory_space<vmem>>, vector<8x128xf32>
    tpu.vector_store %arg6[%c0_7, %c0_8], %10 {strides = array<i32>} : memref<8x128xf32, #tpu.memory_space<vmem>>, vector<8x128xf32>,
    return
  }
}

</mosaic_0001>

<llo_original>
// kernel: generator_forward.1
$region0: #{generator_forward.1}
  #allocation0 [shape = 'u32[]', space=smem, size = 0x4, offset = 0x4, fixed_abs, tag = 'smem constant byte address 0x4 - core index']
  #allocation1 [shape = 'u32[144,128]{1,0:T(1,128)}', space=vmem, size = 0x12000, scoped, tag = 'internal scratch']
  %s0 = inlined_call_operand.vmem [shape: f32[8,128], index: 0, kind: input, shape index: {}]
  %s1 = inlined_call_operand.hbm [shape: bf16[2,128,128], index: 1, kind: input, shape index: {}]
  %s2 = inlined_call_operand.vmem [shape: f32[2,1,128], index: 2, kind: input, shape index: {}]
  %s3 = inlined_call_operand.vmem [shape: f32[2,1,128], index: 3, kind: input, shape index: {}]
  %s4 = inlined_call_operand.hbm [shape: bf16[128,128], index: 4, kind: input, shape index: {}]
  %s5 = inlined_call_operand.vmem [shape: f32[1,128], index: 5, kind: input, shape index: {}]
  %s6 = inlined_call_operand.hbm [shape: f32[8,128], index: 6, kind: output, shape index: {}]
  %s7 = sld [smem:[#allocation0]]
  $region49: #{generator_forward.1} parent=0
    _
  %s9 = ssub.s32 1, %s7
  %s10 = scalar_select 0, %s9, %s7
  $region1: #{generator_forward.1} parent=0
    #allocation2 [shape = 'u8[65536]{0}', space=vmem, size = 0x10000, scoped, tag = 'input window, operand 1, single buffered']
    #allocation3 [shape = 's32[1]{0}', space=sflag, size = 0x4, scoped, tag = 'scoped memory for generator_forward.1']
    #allocation4 [shape = 's32[1]{0}', space=sflag, size = 0x4, scoped, tag = 'scoped memory for generator_forward.1']
    #allocation5 [shape = 'u8[32768]{0}', space=vmem, size = 0x8000, scoped, tag = 'input window, operand 4, single buffered']
    #allocation6 [shape = 's32[1]{0}', space=sflag, size = 0x4, scoped, tag = 'scoped memory for generator_forward.1']
    #allocation7 [shape = 'u8[4096]{0}', space=vmem, size = 0x1000, scoped, tag = 'output window, operand 0, single buffered']
    %11 = vsyncpa [#allocation3], 0
    %12 = vsyncpa [#allocation6], 0
    %13 = vsyncpa [#allocation4], 0
    // Predicated region
    $region2: #{generator_forward.1} parent=1 // pred_check
      _
    $region3: #{generator_forward.1} parent=1 // pred_check_branch
      %15 = sbr.rel (0) target = $region5
    $region4: #{generator_forward.1} parent=1 // pred_region
      _
    $region5: #{generator_forward.1} parent=1 // pred_fallthru
      _
    // Predicated region
    $region6: #{generator_forward.1} parent=1 // pred_check
      _
    $region7: #{generator_forward.1} parent=1 // pred_check_branch
      %17 = sbr.rel (0) target = $region9
    $region8: #{generator_forward.1} parent=1 // pred_region
      %s19 = ssub.s32 2048, 2048
      %20 = vsyncadd [#allocation3], %s19
      %s21 = sshll.u32 [#allocation2], 4
      %s22 = int_to_ptr.vmem [resolvable:$true] %s21
      %27 = dma.hbm_to_vmem [thread:$0]  %s1, 2048, %s22, [#allocation3], 64, 64, 4
    $region9: #{generator_forward.1} parent=1 // pred_fallthru
      _
    // Predicated region
    $region10: #{generator_forward.1} parent=1 // pred_check
      _
    $region11: #{generator_forward.1} parent=1 // pred_check_branch
      %29 = sbr.rel (0) target = $region13
    $region12: #{generator_forward.1} parent=1 // pred_region
      _
    $region13: #{generator_forward.1} parent=1 // pred_fallthru
      _
    // Predicated region
    $region14: #{generator_forward.1} parent=1 // pred_check
      _
    $region15: #{generator_forward.1} parent=1 // pred_check_branch
      %31 = sbr.rel (0) target = $region17
    $region16: #{generator_forward.1} parent=1 // pred_region
      _
    $region17: #{generator_forward.1} parent=1 // pred_fallthru
      _
    // Predicated region
    $region18: #{generator_forward.1} parent=1 // pred_check
      _
    $region19: #{generator_forward.1} parent=1 // pred_check_branch
      %33 = sbr.rel (0) target = $region21
    $region20: #{generator_forward.1} parent=1 // pred_region
      %s35 = ssub.s32 1024, 1024
      %36 = vsyncadd [#allocation6], %s35
      %s37 = sshll.u32 [#allocation5], 4
      %s38 = int_to_ptr.vmem [resolvable:$true] %s37
      %43 = dma.hbm_to_vmem [thread:$0]  %s4, 1024, %s38, [#allocation6], 64, 64, 4
    $region21: #{generator_forward.1} parent=1 // pred_fallthru
      _
    // Predicated region
    $region22: #{generator_forward.1} parent=1 // pred_check
      _
    $region23: #{generator_forward.1} parent=1 // pred_check_branch
      %45 = sbr.rel (0) target = $region25
    $region24: #{generator_forward.1} parent=1 // pred_region
      _
    $region25: #{generator_forward.1} parent=1 // pred_fallthru
      _
    // Predicated region
    $region26: #{generator_forward.1} parent=1 // pred_check
      _
    $region27: #{generator_forward.1} parent=1 // pred_check_branch
      %47 = sbr.rel (0) target = $region29
    $region28: #{generator_forward.1} parent=1 // pred_region
      %48 = dma.done [#allocation3], 2048
    $region29: #{generator_forward.1} parent=1 // pred_fallthru
      _
    // Predicated region
    $region30: #{generator_forward.1} parent=1 // pred_check
      _
    $region31: #{generator_forward.1} parent=1 // pred_check_branch
      %50 = sbr.rel (0) target = $region33
    $region32: #{generator_forward.1} parent=1 // pred_region
      %51 = dma.done [#allocation6], 1024
    $region33: #{generator_forward.1} parent=1 // pred_fallthru
      _
    %v53 = vld [vmem:[%s0] sm:$0xff]
    loop: start=0, step=1, limit=2
    $region34: #{generator_forward.1} parent=1 // loop_pre_header
      _
    $region35: #{generator_forward.1} parent=1 // loop_header
      %s55 = sphi 0, %s59
      %p56 = scmp.ge.s32.totalorder %s55, 2
      %v60 = vphi %v53, %v207
    $region36: #{generator_forward.1} parent=1 // loop_header_branch
      %58 = sbr.rel (%p56) target = $region40
    $region37: #{generator_forward.1} parent=1 // loop_body
      %s61 = smul.u32 %s55, 16
      %s62 = smul.addr %s61, 4
      %s63 = scalar_lea.vmem [#allocation2], %s62
      %v64 = vld [vmem:[%s63] sm:$0xf]
      %v65 = vld [vmem:[%s63 + $0x4] sm:$0xf]
      %v66 = vld [vmem:[%s63 + $0x8] sm:$0xf]
      %v67 = vld [vmem:[%s63 + $0xc] sm:$0xf]
      %v68 = vld [vmem:[%s63 + $0x10] sm:$0xf]
      %v69 = vld [vmem:[%s63 + $0x14] sm:$0xf]
      %v70 = vld [vmem:[%s63 + $0x18] sm:$0xf]
      %v71 = vld [vmem:[%s63 + $0x1c] sm:$0xf]
      %v72 = vld [vmem:[%s63 + $0x20] sm:$0xf]
      %v73 = vld [vmem:[%s63 + $0x24] sm:$0xf]
      %v74 = vld [vmem:[%s63 + $0x28] sm:$0xf]
      %v75 = vld [vmem:[%s63 + $0x2c] sm:$0xf]
      %v76 = vld [vmem:[%s63 + $0x30] sm:$0xf]
      %v77 = vld [vmem:[%s63 + $0x34] sm:$0xf]
      %v78 = vld [vmem:[%s63 + $0x38] sm:$0xf]
      %v79 = vld [vmem:[%s63 + $0x3c] sm:$0xf]
      %v80 = vpack.c.bf16 %v60, %v60
      %v97 = vunpack.c.l.b16 %v64
      %v98 = vunpack.c.l.b16 %v65
      %v99 = vunpack.c.l.b16 %v66
      %v100 = vunpack.c.l.b16 %v67
      %v101 = vunpack.c.l.b16 %v68
      %v102 = vunpack.c.l.b16 %v69
      %v103 = vunpack.c.l.b16 %v70
      %v104 = vunpack.c.l.b16 %v71
      %v105 = vunpack.c.l.b16 %v72
      %v106 = vunpack.c.l.b16 %v73
      %v107 = vunpack.c.l.b16 %v74
      %v108 = vunpack.c.l.b16 %v75
      %v109 = vunpack.c.l.b16 %v76
      %v110 = vunpack.c.l.b16 %v77
      %v111 = vunpack.c.l.b16 %v78
      %v112 = vunpack.c.l.b16 %v79
      %v113 = vpack.c.b16 %v98, %v97
      %v114 = vpack.c.b16 %v100, %v99
      %v115 = vpack.c.b16 %v102, %v101
      %v116 = vpack.c.b16 %v104, %v103
      %v117 = vpack.c.b16 %v106, %v105
      %v118 = vpack.c.b16 %v108, %v107
      %v119 = vpack.c.b16 %v110, %v109
      %v120 = vpack.c.b16 %v112, %v111
      %129 = vmatprep.subr.bf16.mxu0 0
      %130 = vmatpush1.bf16.msra.mxu0 %v120
      %131 = vmatprep.subr.bf16.mxu0 0
      %132 = vmatpush1.bf16.msra.mxu0 %v119
      %133 = vmatprep.subr.bf16.mxu0 0
      %134 = vmatpush1.bf16.msra.mxu0 %v118
      %135 = vmatprep.subr.bf16.mxu0 0
      %136 = vmatpush1.bf16.msra.mxu0 %v117
      %137 = vmatprep.subr.bf16.mxu0 0
      %138 = vmatpush1.bf16.msra.mxu0 %v116
      %139 = vmatprep.subr.bf16.mxu0 0
      %140 = vmatpush1.bf16.msra.mxu0 %v115
      %141 = vmatprep.subr.bf16.mxu0 0
      %142 = vmatpush1.bf16.msra.mxu0 %v114
      %143 = vmatprep.subr.bf16.mxu0 0
      %144 = vmatpush1.bf16.msra.mxu0 %v113
      %145 = vmatprep.subr.bf16.mxu0 0
      %146 = vmatpush2.bf16.msra.mxu0 0
      %147 = vmatprep.subr.bf16.mxu0 0
      %148 = vmatpush2.bf16.msra.mxu0 0
      %149 = vmatprep.subr.bf16.mxu0 0
      %150 = vmatpush2.bf16.msra.mxu0 0
      %151 = vmatprep.subr.bf16.mxu0 0
      %152 = vmatpush2.bf16.msra.mxu0 0
      %153 = vmatprep.subr.bf16.mxu0 0
      %154 = vmatpush2.bf16.msra.mxu0 0
      %155 = vmatprep.subr.bf16.mxu0 0
      %156 = vmatpush2.bf16.msra.mxu0 0
      %157 = vmatprep.subr.bf16.mxu0 0
      %158 = vmatpush2.bf16.msra.mxu0 0
      %159 = vmatprep.subr.bf16.mxu0 0
      %160 = vmatpush2.bf16.msra.mxu0 0
      %161 = vmatprep.mubr.bf16.mxu0 0
      %162 = vmatmul.mubr.bf16.gmra.mxu0 %v80
      %v163 = vpop.f32.mrf.mxu0
      %v164 = vadd.f32 0.0, %v163
      %v165 = vpop.f32.mrf.mxu0
      %v166 = vpop.f32.mrf.mxu0
      %v167 = vpop.f32.mrf.mxu0
      %168 = vdwg.mxu0
      %v169 = vrot.slane %v164, 4
      %v170 = vadd.f32 %v164, %v169
      %v171 = vrot.slane %v170, 2
      %v172 = vadd.f32 %v170, %v171
      %v173 = vrot.slane %v172, 1
      %v174 = vadd.f32 %v172, %v173
      %v175 = vrcp.pop 8.0
      %v176 = vmul.f32 %v174, %v175
      %v177 = vsub.f32 %v164, %v176
      %v178 = vmul.f32 %v177, %v177
      %v179 = vrot.slane %v178, 4
      %v180 = vadd.f32 %v178, %v179
      %v181 = vrot.slane %v180, 2
      %v182 = vadd.f32 %v180, %v181
      %v183 = vrot.slane %v182, 1
      %v184 = vadd.f32 %v182, %v183
      %v185 = vmul.f32 %v184, %v175
      %s186 = scalar_lea.vmem %s2, %s55
      %v187 = vld [vmem:[%s186] sm:$0x1]
      %v188 = vadd.f32 %v185, 1e-05
      %v189 = vrsqrt.pop %v188
      %v190 = vmul.f32 %v187, %v189
      %v192 = vlaneseq
      %v193 = vshrl.u32 %v192, 7
      %v194 = vsub.s32 0, %v193
      %v195 = vrot.slane %v190, %v194
      %v197 = vmul.f32 %v177, %v195
      %s198 = scalar_lea.vmem %s3, %s55
      %v199 = vld [vmem:[%s198] sm:$0x1]
      %v201 = vlaneseq
      %v202 = vshrl.u32 %v201, 7
      %v203 = vsub.s32 0, %v202
      %v204 = vrot.slane %v199, %v203
      %v206 = vadd.f32 %v197, %v204
      %v207 = vmax.f32 %v206, 0.0
    $region38: #{generator_forward.1} parent=1 // loop_footer
      %s59 = sadd.s32 1, %s55
    $region39: #{generator_forward.1} parent=1 // loop_footer_branch
      %54 = sbr.rel target = $region35
    $region40: #{generator_forward.1} parent=1 // loop_exit
      _
    %v208 = vpack.c.bf16 %v60, %v60
    %v209 = vld [vmem:[#allocation5] sm:$0xf]
    %v210 = vld [vmem:[#allocation5 + $0x4] sm:$0xf]
    %v211 = vld [vmem:[#allocation5 + $0x8] sm:$0xf]
    %v212 = vld [vmem:[#allocation5 + $0xc] sm:$0xf]
    %v213 = vld [vmem:[#allocation5 + $0x10] sm:$0xf]
    %v214 = vld [vmem:[#allocation5 + $0x14] sm:$0xf]
    %v215 = vld [vmem:[#allocation5 + $0x18] sm:$0xf]
    %v216 = vld [vmem:[#allocation5 + $0x1c] sm:$0xf]
    %v217 = vld [vmem:[#allocation5 + $0x20] sm:$0xf]
    %v218 = vld [vmem:[#allocation5 + $0x24] sm:$0xf]
    %v219 = vld [vmem:[#allocation5 + $0x28] sm:$0xf]
    %v220 = vld [vmem:[#allocation5 + $0x2c] sm:$0xf]
    %v221 = vld [vmem:[#allocation5 + $0x30] sm:$0xf]
    %v222 = vld [vmem:[#allocation5 + $0x34] sm:$0xf]
    %v223 = vld [vmem:[#allocation5 + $0x38] sm:$0xf]
    %v224 = vld [vmem:[#allocation5 + $0x3c] sm:$0xf]
    %v225 = vld [vmem:[%s5] sm:$0x1]
    %v227 = vlaneseq
    %v228 = vshrl.u32 %v227, 7
    %v229 = vsub.s32 0, %v228
    %v230 = vrot.slane %v225, %v229
    %v248 = vunpack.c.l.b16 %v209
    %v249 = vunpack.c.l.b16 %v210
    %v250 = vunpack.c.l.b16 %v211
    %v251 = vunpack.c.l.b16 %v212
    %v252 = vunpack.c.l.b16 %v213
    %v253 = vunpack.c.l.b16 %v214
    %v254 = vunpack.c.l.b16 %v215
    %v255 = vunpack.c.l.b16 %v216
    %v256 = vunpack.c.l.b16 %v217
    %v257 = vunpack.c.l.b16 %v218
    %v258 = vunpack.c.l.b16 %v219
    %v259 = vunpack.c.l.b16 %v220
    %v260 = vunpack.c.l.b16 %v221
    %v261 = vunpack.c.l.b16 %v222
    %v262 = vunpack.c.l.b16 %v223
    %v263 = vunpack.c.l.b16 %v224
    %v264 = vpack.c.b16 %v249, %v248
    %v265 = vpack.c.b16 %v251, %v250
    %v266 = vpack.c.b16 %v253, %v252
    %v267 = vpack.c.b16 %v255, %v254
    %v268 = vpack.c.b16 %v257, %v256
    %v269 = vpack.c.b16 %v259, %v258
    %v270 = vpack.c.b16 %v261, %v260
    %v271 = vpack.c.b16 %v263, %v262
    %280 = vmatprep.subr.bf16.mxu0 0
    %281 = vmatpush1.bf16.msra.mxu0 %v271
    %282 = vmatprep.subr.bf16.mxu0 0
    %283 = vmatpush1.bf16.msra.mxu0 %v270
    %284 = vmatprep.subr.bf16.mxu0 0
    %285 = vmatpush1.bf16.msra.mxu0 %v269
    %286 = vmatprep.subr.bf16.mxu0 0
    %287 = vmatpush1.bf16.msra.mxu0 %v268
    %288 = vmatprep.subr.bf16.mxu0 0
    %289 = vmatpush1.bf16.msra.mxu0 %v267
    %290 = vmatprep.subr.bf16.mxu0 0
    %291 = vmatpush1.bf16.msra.mxu0 %v266
    %292 = vmatprep.subr.bf16.mxu0 0
    %293 = vmatpush1.bf16.msra.mxu0 %v265
    %294 = vmatprep.subr.bf16.mxu0 0
    %295 = vmatpush1.bf16.msra.mxu0 %v264
    %296 = vmatprep.subr.bf16.mxu0 0
    %297 = vmatpush2.bf16.msra.mxu0 0
    %298 = vmatprep.subr.bf16.mxu0 0
    %299 = vmatpush2.bf16.msra.mxu0 0
    %300 = vmatprep.subr.bf16.mxu0 0
    %301 = vmatpush2.bf16.msra.mxu0 0
    %302 = vmatprep.subr.bf16.mxu0 0
    %303 = vmatpush2.bf16.msra.mxu0 0
    %304 = vmatprep.subr.bf16.mxu0 0
    %305 = vmatpush2.bf16.msra.mxu0 0
    %306 = vmatprep.subr.bf16.mxu0 0
    %307 = vmatpush2.bf16.msra.mxu0 0
    %308 = vmatprep.subr.bf16.mxu0 0
    %309 = vmatpush2.bf16.msra.mxu0 0
    %310 = vmatprep.subr.bf16.mxu0 0
    %311 = vmatpush2.bf16.msra.mxu0 0
    %312 = vmatprep.mubr.bf16.mxu0 0
    %313 = vmatmul.mubr.bf16.gmra.mxu0 %v208
    %v314 = vpop.f32.mrf.mxu0
    %v315 = vadd.f32 %v230, %v314
    %v316 = vpop.f32.mrf.mxu0
    %v317 = vpop.f32.mrf.mxu0
    %v318 = vpop.f32.mrf.mxu0
    %319 = vdwg.mxu0
    %v320 = vmax.f32 %v315, 0.0
    %321 = vst [vmem:[#allocation7] sm:$0xff] %v320
    // Predicated region
    $region41: #{generator_forward.1} parent=1 // pred_check
      _
    $region42: #{generator_forward.1} parent=1 // pred_check_branch
      %323 = sbr.rel (0) target = $region44
    $region43: #{generator_forward.1} parent=1 // pred_region
      %s325 = ssub.s32 128, 128
      %326 = vsyncadd [#allocation4], %s325
      %s328 = sshll.u32 [#allocation7], 4
      %s329 = int_to_ptr.vmem [resolvable:$true] %s328
      %331 = dma.vmem_to_hbm [thread:$0]  %s329, 128, %s6, [#allocation4]
    $region44: #{generator_forward.1} parent=1 // pred_fallthru
      _
    // Predicated region
    $region45: #{generator_forward.1} parent=1 // pred_check
      _
    $region46: #{generator_forward.1} parent=1 // pred_check_branch
      %333 = sbr.rel (0) target = $region48
    $region47: #{generator_forward.1} parent=1 // pred_region
      %334 = dma.done [#allocation4], 128
    $region48: #{generator_forward.1} parent=1 // pred_fallthru
      _
    %335 = vsyncpa [#allocation3], 1
    %336 = vsyncpa [#allocation6], 1
    %337 = vsyncpa [#allocation4], 1

</llo_original>
